<compile_context>
chip_gen: v7x
topology: tpu7x:2x2x1
jax: 0.10.0
libtpu: 0.0.40
codegen_flags: <defaults>
</compile_context>

<pallas_src>
import functools

import jax
import jax.numpy as jnp
from jax import lax
from jax.experimental import pallas as pl
from jax.experimental.pallas import tpu as pltpu

LANE = 128
SUBLANE = 8
_VMEM_LIMIT = 48 * 1024 * 1024  # safe on v7x (64 MiB physical) and v5e/v6e


def _round_up(x, m):
    return (x + m - 1) // m * m


def _pick_tile(dim, target, align):
    """Largest multiple of `align` that divides `dim` and is <= target."""
    t = min(target, dim)
    for c in range(t, 0, -1):
        if dim % c == 0 and c % align == 0:
            return c
    return dim


# --------------------------------------------------------------------------
# Kernel 1: tiled matmul + (folded BN) bias + optional ReLU    (conv1)
# --------------------------------------------------------------------------
def _matmul_bias_kernel(x_ref, w_ref, b_ref, o_ref, acc_ref, *, relu):
    @pl.when(pl.program_id(2) == 0)
    def _init():
        acc_ref[...] = jnp.zeros_like(acc_ref)

    acc_ref[...] += jnp.dot(x_ref[...], w_ref[...],
                            preferred_element_type=jnp.float32)

    @pl.when(pl.program_id(2) == pl.num_programs(2) - 1)
    def _finalize():
        y = acc_ref[...] + b_ref[...]
        if relu:
            y = jnp.maximum(y, 0.0)
        o_ref[...] = y.astype(o_ref.dtype)


def matmul_bias(x2d, w, bias, *, relu, out_dtype=jnp.bfloat16,
                tm_target=256, tn_target=256, tk_target=512):
    m, k = x2d.shape
    k2, n = w.shape
    assert k == k2 and bias.shape == (1, n)
    tm = _pick_tile(m, tm_target, SUBLANE)
    tn = _pick_tile(n, tn_target, LANE)
    tk = _pick_tile(k, tk_target, LANE)
    grid = (m // tm, n // tn, k // tk)
    flops = 2 * m * n * k
    bytes_accessed = int((m * k + k * n) * x2d.dtype.itemsize
                         + m * n * jnp.dtype(out_dtype).itemsize)
    kern = functools.partial(_matmul_bias_kernel, relu=relu)
    return pl.pallas_call(
        kern,
        out_shape=jax.ShapeDtypeStruct((m, n), out_dtype),
        grid=grid,
        in_specs=[
            pl.BlockSpec((tm, tk), lambda i, j, kk: (i, kk)),
            pl.BlockSpec((tk, tn), lambda i, j, kk: (kk, j)),
            pl.BlockSpec((1, tn), lambda i, j, kk: (0, j)),
        ],
        out_specs=pl.BlockSpec((tm, tn), lambda i, j, kk: (i, j)),
        scratch_shapes=[pltpu.VMEM((tm, tn), jnp.float32)],
        compiler_params=pltpu.CompilerParams(
            dimension_semantics=("parallel", "parallel", "arbitrary"),
            vmem_limit_bytes=_VMEM_LIMIT),
        cost_estimate=pl.CostEstimate(flops=flops, transcendentals=0,
                                      bytes_accessed=bytes_accessed),
    )(x2d, w, bias)


# --------------------------------------------------------------------------
# Kernel 2: per-batch gate (stable 2-way softmax of channel-half means)
# --------------------------------------------------------------------------
def _gate_kernel(x_ref, o_ref, *, cin, half, scale):
    xv = x_ref[...].astype(jnp.float32)                 # (N, H*W, Cp)
    n, hw, _ = xv.shape
    cidx = lax.broadcasted_iota(jnp.int32, xv.shape, 2)
    s1 = jnp.sum(jnp.sum(jnp.where(cidx < half, xv, 0.0), axis=2),
                 axis=1, keepdims=True)                 # (N, 1)
    s2 = jnp.sum(jnp.sum(jnp.where((cidx >= half) & (cidx < cin), xv, 0.0),
                         axis=2), axis=1, keepdims=True)
    m1 = (scale / (hw * half)) * s1
    m2 = (scale / (hw * (cin - half))) * s2
    mmax = jnp.maximum(m1, m2)                          # stable softmax
    e1 = jnp.exp(m1 - mmax)
    e2 = jnp.exp(m2 - mmax)
    g = e1 / (e1 + e2)                                  # (N, 1)
    o_ref[...] = jnp.broadcast_to(g, (n, LANE))


def gate_from_input(x3, *, cin, half, scale):
    n, hw, cp = x3.shape
    kern = functools.partial(_gate_kernel, cin=cin, half=half, scale=float(scale))
    return pl.pallas_call(
        kern,
        out_shape=jax.ShapeDtypeStruct((n, LANE), jnp.float32),
        grid=(1,),
        in_specs=[pl.BlockSpec((n, hw, cp), lambda i: (0, 0, 0))],
        out_specs=pl.BlockSpec((n, LANE), lambda i: (0, 0)),
        compiler_params=pltpu.CompilerParams(
            dimension_semantics=("arbitrary",),
            vmem_limit_bytes=_VMEM_LIMIT),
    )(x3)


# --------------------------------------------------------------------------
# Kernel 3: 3x3 conv (pad=1, stride s) + folded BN + ReLU, im2col in VMEM
# --------------------------------------------------------------------------
def _conv3x3_kernel(ph_ref, w_ref, b_ref, o_ref, col_ref, *, stride, ho, wo, cp):
    # ph_ref block: (s*s, 1, Hq, Wq, Cp) -- stride-phase split of the padded
    # activation for this batch image.  Build the (Ho*Wo, 9*Cp) patch matrix
    # in VMEM with fully static copies, then one MXU matmul.
    for dh in range(3):
        for dw in range(3):
            t = dh * 3 + dw
            pidx = (dh % stride) * stride + (dw % stride)
            r0 = dh // stride
            c0 = dw // stride
            for oh in range(ho):
                col_ref[oh * wo:(oh + 1) * wo, t * cp:(t + 1) * cp] = (
                    ph_ref[pidx, 0, r0 + oh, c0:c0 + wo, :])
    y = jnp.dot(col_ref[...], w_ref[...], preferred_element_type=jnp.float32)
    y = jnp.maximum(y + b_ref[...], 0.0)
    o_ref[0] = y.astype(o_ref.dtype)


def conv3x3_bias_relu(phases, w2, b2, *, stride, ho, wo):
    ss, n, hq, wq, cp = phases.shape
    assert ss == stride * stride
    kern = functools.partial(_conv3x3_kernel, stride=stride, ho=ho, wo=wo, cp=cp)
    return pl.pallas_call(
        kern,
        out_shape=jax.ShapeDtypeStruct((n, ho * wo, cp), jnp.bfloat16),
        grid=(n,),
        in_specs=[
            pl.BlockSpec((ss, 1, hq, wq, cp), lambda b: (0, b, 0, 0, 0)),
            pl.BlockSpec((9 * cp, cp), lambda b: (0, 0)),
            pl.BlockSpec((1, cp), lambda b: (0, 0)),
        ],
        out_specs=pl.BlockSpec((1, ho * wo, cp), lambda b: (b, 0, 0)),
        scratch_shapes=[pltpu.VMEM((ho * wo, 9 * cp), jnp.bfloat16)],
        compiler_params=pltpu.CompilerParams(
            dimension_semantics=("parallel",),
            vmem_limit_bytes=_VMEM_LIMIT),
        cost_estimate=pl.CostEstimate(
            flops=2 * n * ho * wo * 9 * cp * cp, transcendentals=0,
            bytes_accessed=int(phases.size * 2 + 9 * cp * cp * 2
                               + n * ho * wo * cp * 2)),
    )(phases, w2, b2)


# --------------------------------------------------------------------------
# Kernel 4: fused conv3 + BN3 + shortcut(+BN) + gate blend + ReLU
# --------------------------------------------------------------------------
def _tail_proj_kernel(g_ref, y2_ref, w3_ref, b3_ref, xs_ref, wsc_ref, bsc_ref,
                      o_ref):
    b = pl.program_id(0)
    g = g_ref[b, 0]
    main = jnp.dot(y2_ref[0], w3_ref[...],
                   preferred_element_type=jnp.float32) + b3_ref[...]
    short = jnp.dot(xs_ref[0], wsc_ref[...],
                    preferred_element_type=jnp.float32) + bsc_ref[...]
    out = g * main + (1.0 - g) * short
    o_ref[0] = jnp.maximum(out, 0.0).astype(o_ref.dtype)


def _tail_identity_kernel(g_ref, y2_ref, w3_ref, b3_ref, xid_ref, o_ref):
    b = pl.program_id(0)
    g = g_ref[b, 0]
    main = jnp.dot(y2_ref[0], w3_ref[...],
                   preferred_element_type=jnp.float32) + b3_ref[...]
    short = xid_ref[0].astype(jnp.float32)
    out = g * main + (1.0 - g) * short
    o_ref[0] = jnp.maximum(out, 0.0).astype(o_ref.dtype)


def fused_conv3_shortcut_gate(gate, y2, w3, b3, short_in, wsc=None, bsc=None,
                              *, tm_target=256, tn_target=256):
    n, m2, pp = y2.shape
    c4p = w3.shape[1]
    tm = _pick_tile(m2, tm_target, SUBLANE)
    tn = _pick_tile(c4p, tn_target, LANE)
    grid = (n, m2 // tm, c4p // tn)

    gate_spec = pl.BlockSpec(memory_space=pltpu.MemorySpace.SMEM)
    common_in = [
        gate_spec,
        pl.BlockSpec((1, tm, pp), lambda b, i, j: (b, i, 0)),
        pl.BlockSpec((pp, tn), lambda b, i, j: (0, j)),
        pl.BlockSpec((1, tn), lambda b, i, j: (0, j)),
    ]
    out_spec = pl.BlockSpec((1, tm, tn), lambda b, i, j: (b, i, j))

    if wsc is not None:
        cinp = short_in.shape[2]
        in_specs = common_in + [
            pl.BlockSpec((1, tm, cinp), lambda b, i, j: (b, i, 0)),
            pl.BlockSpec((cinp, tn), lambda b, i, j: (0, j)),
            pl.BlockSpec((1, tn), lambda b, i, j: (0, j)),
        ]
        args = (gate, y2, w3, b3, short_in, wsc, bsc)
        kern = _tail_proj_kernel
        flops = 2 * n * m2 * c4p * (pp + cinp)
    else:
        in_specs = common_in + [
            pl.BlockSpec((1, tm, tn), lambda b, i, j: (b, i, j)),
        ]
        args = (gate, y2, w3, b3, short_in)
        kern = _tail_identity_kernel
        flops = 2 * n * m2 * c4p * pp

    return pl.pallas_call(
        kern,
        out_shape=jax.ShapeDtypeStruct((n, m2, c4p), jnp.float32),
        grid=grid,
        in_specs=in_specs,
        out_specs=out_spec,
        compiler_params=pltpu.CompilerParams(
            dimension_semantics=("parallel", "parallel", "parallel"),
            vmem_limit_bytes=_VMEM_LIMIT),
        cost_estimate=pl.CostEstimate(
            flops=flops, transcendentals=0,
            bytes_accessed=int(y2.size * 2 + short_in.size * 2
                               + n * m2 * c4p * 4)),
    )(*args)


# --------------------------------------------------------------------------
# Parameters (PyTorch-equivalent init), BN fold + channel padding + bf16 cast
# --------------------------------------------------------------------------
def init_params(key, in_planes, planes, stride):
    expansion = 4
    ks = jax.random.split(key, 20)
    eps = 1e-5

    def bn_fold(kg, kb, km, kv, c):
        gamma = jax.random.uniform(kg, (c,), minval=0.5, maxval=1.5)
        beta = jax.random.normal(kb, (c,)) * 0.1
        mean = jax.random.normal(km, (c,)) * 0.1
        var = jax.random.uniform(kv, (c,), minval=0.5, maxval=1.5)
        s = gamma / jnp.sqrt(var + eps)
        return s.astype(jnp.float32), (beta - mean * s).astype(jnp.float32)

    p = {}
    p["w1"] = (jax.random.normal(ks[0], (in_planes, planes)) * 0.1).astype(jnp.float32)
    p["s1"], p["b1"] = bn_fold(ks[1], ks[2], ks[3], ks[4], planes)
    p["w2"] = (jax.random.normal(ks[5], (3, 3, planes, planes)) * 0.1).astype(jnp.float32)  # HWIO
    p["s2"], p["b2"] = bn_fold(ks[6], ks[7], ks[8], ks[9], planes)
    p["w3"] = (jax.random.normal(ks[10], (planes, expansion * planes)) * 0.1).astype(jnp.float32)
    p["s3"], p["b3"] = bn_fold(ks[11], ks[12], ks[13], ks[14], expansion * planes)
    if stride != 1 or in_planes != expansion * planes:
        p["wsc"] = (jax.random.normal(ks[15], (in_planes, expansion * planes)) * 0.1).astype(jnp.float32)
        p["ssc"], p["bsc"] = bn_fold(ks[16], ks[17], ks[18], ks[19], expansion * planes)
    return p


def prepare_params(p, in_planes, planes, stride):
    expansion = 4
    cin_p = _round_up(in_planes, LANE)
    pln_p = _round_up(planes, LANE)
    c4 = expansion * planes
    c4_p = _round_up(c4, LANE)

    def pad2(w, r, c):
        return jnp.pad(w, ((0, r - w.shape[0]), (0, c - w.shape[1])))

    def pad_bias(b, c):
        return jnp.pad(b, (0, c - b.shape[0])).reshape(1, c).astype(jnp.float32)

    q = {"cin_p": cin_p, "planes_p": pln_p, "c4_p": c4_p}
    # BN scale folded into weight columns -> epilogue is bias + ReLU only.
    q["w1"] = pad2(p["w1"] * p["s1"][None, :], cin_p, pln_p).astype(jnp.bfloat16)
    q["b1"] = pad_bias(p["b1"], pln_p)
    w2f = p["w2"] * p["s2"][None, None, None, :]
    w2f = jnp.pad(w2f, ((0, 0), (0, 0), (0, pln_p - planes), (0, pln_p - planes)))
    q["w2_hwio"] = w2f.astype(jnp.bfloat16)                # for the reference conv
    q["w2"] = w2f.reshape(9 * pln_p, pln_p).astype(jnp.bfloat16)
    q["b2"] = pad_bias(p["b2"], pln_p)
    q["w3"] = pad2(p["w3"] * p["s3"][None, :], pln_p, c4_p).astype(jnp.bfloat16)
    q["b3"] = pad_bias(p["b3"], c4_p)
    if "wsc" in p:
        q["wsc"] = pad2(p["wsc"] * p["ssc"][None, :], cin_p, c4_p).astype(jnp.bfloat16)
        q["bsc"] = pad_bias(p["bsc"], c4_p)
    return q


# --------------------------------------------------------------------------
# Forward pass (accepts / returns NCHW like the PyTorch module)
# --------------------------------------------------------------------------
def bottleneck_forward(x_nchw, q, in_planes, planes, stride, scale):
    expansion = 4
    c4 = expansion * planes
    cin_p, pln_p, c4_p = q["cin_p"], q["planes_p"], q["c4_p"]

    x = jnp.transpose(x_nchw, (0, 2, 3, 1)).astype(jnp.float32)   # NHWC
    n, h, w, cin = x.shape
    assert cin == in_planes
    half = in_planes // 2
    ho = (h - 1) // stride + 1
    wo = (w - 1) // stride + 1

    xp = jnp.pad(x, ((0, 0), (0, 0), (0, 0), (0, cin_p - cin))).astype(jnp.bfloat16)

    # per-batch gate, decoupled from the combine kernel
    gate = gate_from_input(xp.reshape(n, h * w, cin_p),
                           cin=cin, half=half, scale=scale)

    # conv1 (1x1) + BN1 + ReLU
    y1 = matmul_bias(xp.reshape(n * h * w, cin_p), q["w1"], q["b1"], relu=True)
    y1 = y1.reshape(n, h, w, pln_p)

    # conv2 (3x3, stride, pad=1) + BN2 + ReLU: stride-phase split (total size
    # == one activation), 9-tap im2col built in VMEM inside the kernel.
    if stride > 1:
        assert (h + 2) % stride == 0 and (w + 2) % stride == 0, \
            "stride-phase split requires (H+2) % stride == 0"
    y1p = jnp.pad(y1, ((0, 0), (1, 1), (1, 1), (0, 0)))
    phases = jnp.stack([y1p[:, a::stride, b::stride, :]
                        for a in range(stride) for b in range(stride)], axis=0)
    _, _, hq, wq, _ = phases.shape
    assert hq >= ho + (2 // stride) and wq >= wo + (2 // stride)
    y2 = conv3x3_bias_relu(phases, q["w2"], q["b2"], stride=stride, ho=ho, wo=wo)

    # fused conv3 + BN3 + shortcut + gate blend + ReLU
    if "wsc" in q:
        # TODO(synk): move the stride subsample into the kernel via a strided
        # DMA descriptor instead of this (small, 1/stride^2-sized) XLA slice.
        xs = xp[:, ::stride, ::stride, :].reshape(n, ho * wo, cin_p)
        out = fused_conv3_shortcut_gate(gate, y2, q["w3"], q["b3"], xs,
                                        q["wsc"], q["bsc"])
    else:
        xid = xp.reshape(n, h * w, cin_p)
        out = fused_conv3_shortcut_gate(gate, y2, q["w3"], q["b3"], xid)

    out = out.reshape(n, ho, wo, c4_p)[..., :c4]
    return jnp.transpose(out, (0, 3, 1, 2))


# --------------------------------------------------------------------------
# Pure-JAX reference (same folded/padded bf16 params, same cast points)
# --------------------------------------------------------------------------
def reference_forward(x_nchw, q, in_planes, planes, stride, scale):
    expansion = 4
    c4 = expansion * planes
    cin_p, pln_p, c4_p = q["cin_p"], q["planes_p"], q["c4_p"]
    x = jnp.transpose(x_nchw, (0, 2, 3, 1)).astype(jnp.float32)
    n, h, w, cin = x.shape
    half = in_planes // 2
    xp = jnp.pad(x, ((0, 0), (0, 0), (0, 0), (0, cin_p - cin))).astype(jnp.bfloat16)

    y = jnp.dot(xp.reshape(-1, cin_p), q["w1"],
                preferred_element_type=jnp.float32) + q["b1"]
    y = jnp.maximum(y, 0.0).astype(jnp.bfloat16).reshape(n, h, w, pln_p)
    y = lax.conv_general_dilated(y, q["w2_hwio"], (stride, stride),
                                 ((1, 1), (1, 1)),
                                 dimension_numbers=("NHWC", "HWIO", "NHWC"),
                                 preferred_element_type=jnp.float32)
    y = jnp.maximum(y + q["b2"].reshape(1, 1, 1, -1), 0.0).astype(jnp.bfloat16)
    _, ho, wo, _ = y.shape
    y = jnp.dot(y.reshape(-1, pln_p), q["w3"],
                preferred_element_type=jnp.float32) + q["b3"]
    y = y.reshape(n, ho, wo, c4_p)

    xf = xp.astype(jnp.float32)
    m1 = scale * jnp.mean(xf[..., :half], axis=(1, 2, 3), keepdims=True)
    m2 = scale * jnp.mean(xf[..., half:cin], axis=(1, 2, 3), keepdims=True)
    mm = jnp.maximum(m1, m2)
    g = jnp.exp(m1 - mm) / (jnp.exp(m1 - mm) + jnp.exp(m2 - mm))

    if "wsc" in q:
        xs = xp[:, ::stride, ::stride, :]
        sc = jnp.dot(xs.reshape(-1, cin_p), q["wsc"],
                     preferred_element_type=jnp.float32) + q["bsc"]
        sc = sc.reshape(n, ho, wo, c4_p)
    else:
        sc = xp.astype(jnp.float32).reshape(n, ho, wo, c4_p)

    out = jnp.maximum(g * y + (1.0 - g) * sc, 0.0)[..., :c4]
    return jnp.transpose(out, (0, 3, 1, 2))


# --------------------------------------------------------------------------
if __name__ == "__main__":
    # batch=2, in_planes=8, 8x8 spatial, planes=4, stride=2 -> out (2,16,4,4)
    N, IN_PLANES, H, W = 2, 8, 8, 8
    PLANES, STRIDE, SCALE = 4, 2, 10.0

    key = jax.random.PRNGKey(0)
    kx, kp = jax.random.split(key)
    x = jax.random.normal(kx, (N, IN_PLANES, H, W), dtype=jnp.float32)
    raw = init_params(kp, IN_PLANES, PLANES, STRIDE)
    q = prepare_params(raw, IN_PLANES, PLANES, STRIDE)

    out = bottleneck_forward(x, q, IN_PLANES, PLANES, STRIDE, SCALE)
    out = jax.block_until_ready(out)

    ref = jax.block_until_ready(
        reference_forward(x, q, IN_PLANES, PLANES, STRIDE, SCALE))
    assert out.shape == (N, 4 * PLANES, H // STRIDE, W // STRIDE), out.shape
    max_err = float(jnp.max(jnp.abs(out - ref)))
    # bf16 MXU inputs (per perf feedback) -> tolerance sized for bf16 rounding.
    assert jnp.allclose(out, ref, rtol=1e-2, atol=1e-2), max_err

    print("KERNEL_OK")
</pallas_src>

<mosaic_0001>
module attributes {stable_mosaic.version = 11 : i64} {
  func.func @_gate_kernel(%arg0: i32, %arg1: memref<2x64x128xbf16, #tpu.memory_space<vmem>>, %arg2: memref<2x128xf32, #tpu.memory_space<vmem>>) attributes {dimension_semantics = [#tpu.dimension_semantics<arbitrary>], iteration_bounds = array<i64: 1>, scalar_prefetch = 0 : i64, scratch_operands = 0 : i64, tpu.core_type = #tpu.core_type<tc>, window_params = [{pipeline_mode = #tpu.pipeline_mode<synchronous>, transform_indices = @transform_0, window_bounds = array<i64: 2, 64, 128>}, {pipeline_mode = #tpu.pipeline_mode<synchronous>, transform_indices = @transform_1, window_bounds = array<i64: 2, 128>}]} {
    %c0 = arith.constant 0 : index
    %c0_0 = arith.constant 0 : index
    %c0_1 = arith.constant 0 : index
    %0 = vector.load %arg1[%c0, %c0_0, %c0_1] : memref<2x64x128xbf16, #tpu.memory_space<vmem>>, vector<2x64x128xbf16>
    %1 = arith.extf %0 : vector<2x64x128xbf16> to vector<2x64x128xf32>
    %2 = tpu.iota {dimensions = array<i32: 2>} : vector<2x64x128xi32>
    %c4_i32 = arith.constant 4 : i32
    %3 = vector.broadcast %c4_i32 : i32 to vector<2x64x128xi32>
    %4 = arith.cmpi slt, %2, %3 : vector<2x64x128xi32>
    %cst = arith.constant 0.000000e+00 : f32
    %5 = vector.broadcast %cst : f32 to vector<2x64x128xf32>
    %6 = arith.select %4, %1, %5 : vector<2x64x128xi1>, vector<2x64x128xf32>
    %cst_2 = arith.constant dense<0.000000e+00> : vector<2x64xf32>
    %7 = vector.multi_reduction <add>, %6, %cst_2 [2] : vector<2x64x128xf32> to vector<2x64xf32>
    %cst_3 = arith.constant dense<0.000000e+00> : vector<2xf32>
    %8 = vector.multi_reduction <add>, %7, %cst_3 [1] : vector<2x64xf32> to vector<2xf32>
    %9 = vector.shape_cast %8 : vector<2xf32> to vector<2x1xf32>
    %c4_i32_4 = arith.constant 4 : i32
    %10 = vector.broadcast %c4_i32_4 : i32 to vector<2x64x128xi32>
    %11 = arith.cmpi sge, %2, %10 : vector<2x64x128xi32>
    %c8_i32 = arith.constant 8 : i32
    %12 = vector.broadcast %c8_i32 : i32 to vector<2x64x128xi32>
    %13 = arith.cmpi slt, %2, %12 : vector<2x64x128xi32>
    %14 = arith.andi %11, %13 : vector<2x64x128xi1>
    %cst_5 = arith.constant 0.000000e+00 : f32
    %15 = vector.broadcast %cst_5 : f32 to vector<2x64x128xf32>
    %16 = arith.select %14, %1, %15 : vector<2x64x128xi1>, vector<2x64x128xf32>
    %cst_6 = arith.constant dense<0.000000e+00> : vector<2x64xf32>
    %17 = vector.multi_reduction <add>, %16, %cst_6 [2] : vector<2x64x128xf32> to vector<2x64xf32>
    %cst_7 = arith.constant dense<0.000000e+00> : vector<2xf32>
    %18 = vector.multi_reduction <add>, %17, %cst_7 [1] : vector<2x64xf32> to vector<2xf32>
    %19 = vector.shape_cast %18 : vector<2xf32> to vector<2x1xf32>
    %cst_8 = arith.constant 3.906250e-02 : f32
    %20 = vector.broadcast %cst_8 : f32 to vector<2x1xf32>
    %21 = arith.mulf %20, %9 : vector<2x1xf32>
    %cst_9 = arith.constant 3.906250e-02 : f32
    %22 = vector.broadcast %cst_9 : f32 to vector<2x1xf32>
    %23 = arith.mulf %22, %19 : vector<2x1xf32>
    %24 = arith.maximumf %21, %23 : vector<2x1xf32>
    %25 = arith.subf %21, %24 : vector<2x1xf32>
    %26 = math.exp %25 : vector<2x1xf32>
    %27 = arith.subf %23, %24 : vector<2x1xf32>
    %28 = math.exp %27 : vector<2x1xf32>
    %29 = arith.addf %26, %28 : vector<2x1xf32>
    %30 = arith.divf %26, %29 : vector<2x1xf32>
    %31 = vector.shape_cast %30 : vector<2x1xf32> to vector<2x1xf32>
    %32 = vector.broadcast %31 : vector<2x1xf32> to vector<2x128xf32>
    %c0_10 = arith.constant 0 : index
    %c0_11 = arith.constant 0 : index
    %33 = vector.load %arg2[%c0_10, %c0_11] : memref<2x128xf32, #tpu.memory_space<vmem>>, vector<2x128xf32>
    tpu.vector_store %arg2[%c0_10, %c0_11], %32 {strides = array<i32>} : memref<2x128xf32, #tpu.memory_space<vmem>>, vector<2x128xf32>,
    return
  }
  func.func @transform_0(%arg0: i32) -> (i32, i32, i32) {
    %c0_i32 = arith.constant 0 : i32
    %c0_i32_0 = arith.constant 0 : i32
    %c0_i32_1 = arith.constant 0 : i32
    %c0_i32_2 = arith.constant 0 : i32
    return %c0_i32, %c0_i32_0, %c0_i32_1 : i32, i32, i32
  }
  func.func @transform_1(%arg0: i32) -> (i32, i32) {
    %c0_i32 = arith.constant 0 : i32
    %c0_i32_0 = arith.constant 0 : i32
    %c0_i32_1 = arith.constant 0 : i32
    return %c0_i32, %c0_i32_0 : i32, i32
  }
}

</mosaic_0001>

<llo_original>
// kernel: tpu_custom_call.1
$region0: #{tpu_custom_call.1}
  #allocation0 [shape = 'u32[]', space=smem, size = 0x4, offset = 0x4, fixed_abs, tag = 'smem constant byte address 0x4 - core index']
  #allocation1 [shape = 'u32[144,128]{1,0:T(1,128)}', space=vmem, size = 0x12000, scoped, tag = 'internal scratch']
  %s0 = inlined_call_operand.hbm [shape: bf16[2,64,128], index: 0, kind: input, shape index: {}]
  %s1 = inlined_call_operand.hbm [shape: f32[2,128], index: 1, kind: output, shape index: {}]
  %s2 = sld [smem:[#allocation0]]
  $region18: #{tpu_custom_call.1} parent=0
    _
  %s4 = ssub.s32 1, %s2
  %s5 = scalar_select 0, %s4, %s2
  $region1: #{tpu_custom_call.1} parent=0
    #allocation2 [shape = 'u8[32768]{0}', space=vmem, size = 0x8000, scoped, tag = 'input window, operand 0, single buffered']
    #allocation3 [shape = 's32[1]{0}', space=sflag, size = 0x4, scoped, tag = 'scoped memory for tpu_custom_call.1']
    #allocation4 [shape = 's32[1]{0}', space=sflag, size = 0x4, scoped, tag = 'scoped memory for tpu_custom_call.1']
    #allocation5 [shape = 'u8[1024]{0}', space=vmem, size = 0x400, scoped, tag = 'output window, operand 0, single buffered']
    %6 = vsyncpa [#allocation3], 0
    %7 = vsyncpa [#allocation4], 0
    // Predicated region
    $region2: #{tpu_custom_call.1} parent=1 // pred_check
      _
    $region3: #{tpu_custom_call.1} parent=1 // pred_check_branch
      %9 = sbr.rel (0) target = $region5
    $region4: #{tpu_custom_call.1} parent=1 // pred_region
      %s11 = ssub.s32 1024, 1024
      %12 = vsyncadd [#allocation3], %s11
      %s13 = sshll.u32 [#allocation2], 4
      %s14 = int_to_ptr.vmem [resolvable:$true] %s13
      %19 = dma.hbm_to_vmem [thread:$0]  %s0, 1024, %s14, [#allocation3], 64, 64, 4
    $region5: #{tpu_custom_call.1} parent=1 // pred_fallthru
      _
    // Predicated region
    $region6: #{tpu_custom_call.1} parent=1 // pred_check
      _
    $region7: #{tpu_custom_call.1} parent=1 // pred_check_branch
      %21 = sbr.rel (0) target = $region9
    $region8: #{tpu_custom_call.1} parent=1 // pred_region
      %22 = dma.done [#allocation3], 1024
    $region9: #{tpu_custom_call.1} parent=1 // pred_fallthru
      _
    %v23 = vld [vmem:[#allocation2] sm:$0xf]
    %v24 = vld [vmem:[#allocation2 + $0x4] sm:$0xf]
    %v25 = vld [vmem:[#allocation2 + $0x8] sm:$0xf]
    %v26 = vld [vmem:[#allocation2 + $0xc] sm:$0xf]
    %v27 = vld [vmem:[#allocation2 + $0x10] sm:$0xf]
    %v28 = vld [vmem:[#allocation2 + $0x14] sm:$0xf]
    %v29 = vld [vmem:[#allocation2 + $0x18] sm:$0xf]
    %v30 = vld [vmem:[#allocation2 + $0x1c] sm:$0xf]
    %v31 = vld [vmem:[#allocation2 + $0x20] sm:$0xf]
    %v32 = vld [vmem:[#allocation2 + $0x24] sm:$0xf]
    %v33 = vld [vmem:[#allocation2 + $0x28] sm:$0xf]
    %v34 = vld [vmem:[#allocation2 + $0x2c] sm:$0xf]
    %v35 = vld [vmem:[#allocation2 + $0x30] sm:$0xf]
    %v36 = vld [vmem:[#allocation2 + $0x34] sm:$0xf]
    %v37 = vld [vmem:[#allocation2 + $0x38] sm:$0xf]
    %v38 = vld [vmem:[#allocation2 + $0x3c] sm:$0xf]
    %v39 = vunpack.c.l.bf16 %v23
    %v40 = vunpack.c.l.bf16 %v24
    %v41 = vunpack.c.l.bf16 %v25
    %v42 = vunpack.c.l.bf16 %v26
    %v43 = vunpack.c.l.bf16 %v27
    %v44 = vunpack.c.l.bf16 %v28
    %v45 = vunpack.c.l.bf16 %v29
    %v46 = vunpack.c.l.bf16 %v30
    %v47 = vunpack.c.l.bf16 %v31
    %v48 = vunpack.c.l.bf16 %v32
    %v49 = vunpack.c.l.bf16 %v33
    %v50 = vunpack.c.l.bf16 %v34
    %v51 = vunpack.c.l.bf16 %v35
    %v52 = vunpack.c.l.bf16 %v36
    %v53 = vunpack.c.l.bf16 %v37
    %v54 = vunpack.c.l.bf16 %v38
    %v55 = vlaneseq
    %v56 = vand.u32 %v55, 127
    %vm57 = vcmp.lt.s32.totalorder %v56, 4
    %v58 = vsel %vm57, %v39, 0.0
    %v59 = vsel %vm57, %v40, 0.0
    %v60 = vsel %vm57, %v41, 0.0
    %v61 = vsel %vm57, %v42, 0.0
    %v62 = vsel %vm57, %v43, 0.0
    %v63 = vsel %vm57, %v44, 0.0
    %v64 = vsel %vm57, %v45, 0.0
    %v65 = vsel %vm57, %v46, 0.0
    %v66 = vsel %vm57, %v47, 0.0
    %v67 = vsel %vm57, %v48, 0.0
    %v68 = vsel %vm57, %v49, 0.0
    %v69 = vsel %vm57, %v50, 0.0
    %v70 = vsel %vm57, %v51, 0.0
    %v71 = vsel %vm57, %v52, 0.0
    %v72 = vsel %vm57, %v53, 0.0
    %v73 = vsel %vm57, %v54, 0.0
    %74 = vadd.xlane.f32.xlu0 %v58
    %v75 = vpop.xlane.xlu0 %74
    %76 = vadd.xlane.f32.xlu0 %v59
    %v77 = vpop.xlane.xlu0 %76
    %78 = vadd.xlane.f32.xlu0 %v60
    %v79 = vpop.xlane.xlu0 %78
    %80 = vadd.xlane.f32.xlu0 %v61
    %v81 = vpop.xlane.xlu0 %80
    %82 = vadd.xlane.f32.xlu0 %v62
    %v83 = vpop.xlane.xlu0 %82
    %84 = vadd.xlane.f32.xlu0 %v63
    %v85 = vpop.xlane.xlu0 %84
    %86 = vadd.xlane.f32.xlu0 %v64
    %v87 = vpop.xlane.xlu0 %86
    %88 = vadd.xlane.f32.xlu0 %v65
    %v89 = vpop.xlane.xlu0 %88
    %90 = vadd.xlane.f32.xlu0 %v66
    %v91 = vpop.xlane.xlu0 %90
    %92 = vadd.xlane.f32.xlu0 %v67
    %v93 = vpop.xlane.xlu0 %92
    %94 = vadd.xlane.f32.xlu0 %v68
    %v95 = vpop.xlane.xlu0 %94
    %96 = vadd.xlane.f32.xlu0 %v69
    %v97 = vpop.xlane.xlu0 %96
    %98 = vadd.xlane.f32.xlu0 %v70
    %v99 = vpop.xlane.xlu0 %98
    %100 = vadd.xlane.f32.xlu0 %v71
    %v101 = vpop.xlane.xlu0 %100
    %102 = vadd.xlane.f32.xlu0 %v72
    %v103 = vpop.xlane.xlu0 %102
    %104 = vadd.xlane.f32.xlu0 %v73
    %v105 = vpop.xlane.xlu0 %104
    %v122 = vlaneseq
    %v123 = vshrl.u32 %v122, 7
    %v124 = vsub.s32 %v56, %v123
    %v125 = vrot.slane %v75, %v124
    %v126 = vadd.s32 %v56, 4294967288
    %v127 = vlaneseq
    %v128 = vshrl.u32 %v127, 7
    %v129 = vsub.s32 %v126, %v128
    %v130 = vrot.slane %v77, %v129
    %vm131 = vcmask 130112
    %v132 = vsel %vm131, %v130, %v125
    %v133 = vadd.s32 %v56, 4294967280
    %v134 = vlaneseq
    %v135 = vshrl.u32 %v134, 7
    %v136 = vsub.s32 %v133, %v135
    %v137 = vrot.slane %v79, %v136
    %vm138 = vcmask 195712
    %v139 = vsel %vm138, %v137, %v132
    %v140 = vadd.s32 %v56, 4294967272
    %v141 = vlaneseq
    %v142 = vshrl.u32 %v141, 7
    %v143 = vsub.s32 %v140, %v142
    %v144 = vrot.slane %v81, %v143
    %vm145 = vcmask 261312
    %v146 = vsel %vm145, %v144, %v139
    %v147 = vadd.s32 %v56, 4294967264
    %v148 = vlaneseq
    %v149 = vshrl.u32 %v148, 7
    %v150 = vsub.s32 %v147, %v149
    %v151 = vrot.slane %v83, %v150
    %vm152 = vcmask 326912
    %v153 = vsel %vm152, %v151, %v146
    %v154 = vadd.s32 %v56, 4294967256
    %v155 = vlaneseq
    %v156 = vshrl.u32 %v155, 7
    %v157 = vsub.s32 %v154, %v156
    %v158 = vrot.slane %v85, %v157
    %vm159 = vcmask 392512
    %v160 = vsel %vm159, %v158, %v153
    %v161 = vadd.s32 %v56, 4294967248
    %v162 = vlaneseq
    %v163 = vshrl.u32 %v162, 7
    %v164 = vsub.s32 %v161, %v163
    %v165 = vrot.slane %v87, %v164
    %vm166 = vcmask 458112
    %v167 = vsel %vm166, %v165, %v160
    %v168 = vadd.s32 %v56, 4294967240
    %v169 = vlaneseq
    %v170 = vshrl.u32 %v169, 7
    %v171 = vsub.s32 %v168, %v170
    %v172 = vrot.slane %v89, %v171
    %vm173 = vcmask 523712
    %v174 = vsel %vm173, %v172, %v167
    %v175 = vlaneseq
    %v176 = vshrl.u32 %v175, 7
    %v177 = vsub.s32 %v56, %v176
    %v178 = vrot.slane %v91, %v177
    %v179 = vlaneseq
    %v180 = vshrl.u32 %v179, 7
    %v181 = vsub.s32 %v126, %v180
    %v182 = vrot.slane %v93, %v181
    %v183 = vsel %vm131, %v182, %v178
    %v184 = vlaneseq
    %v185 = vshrl.u32 %v184, 7
    %v186 = vsub.s32 %v133, %v185
    %v187 = vrot.slane %v95, %v186
    %v188 = vsel %vm138, %v187, %v183
    %v189 = vlaneseq
    %v190 = vshrl.u32 %v189, 7
    %v191 = vsub.s32 %v140, %v190
    %v192 = vrot.slane %v97, %v191
    %v193 = vsel %vm145, %v192, %v188
    %v194 = vlaneseq
    %v195 = vshrl.u32 %v194, 7
    %v196 = vsub.s32 %v147, %v195
    %v197 = vrot.slane %v99, %v196
    %v198 = vsel %vm152, %v197, %v193
    %v199 = vlaneseq
    %v200 = vshrl.u32 %v199, 7
    %v201 = vsub.s32 %v154, %v200
    %v202 = vrot.slane %v101, %v201
    %v203 = vsel %vm159, %v202, %v198
    %v204 = vlaneseq
    %v205 = vshrl.u32 %v204, 7
    %v206 = vsub.s32 %v161, %v205
    %v207 = vrot.slane %v103, %v206
    %v208 = vsel %vm166, %v207, %v203
    %v209 = vlaneseq
    %v210 = vshrl.u32 %v209, 7
    %v211 = vsub.s32 %v168, %v210
    %v212 = vrot.slane %v105, %v211
    %v213 = vsel %vm173, %v212, %v208
    %vm214 = vcmask 1041409
    %v215 = vsel %vm214, %v213, %v174
    %vm217 = vcmask 517120
    %v218 = vsel %vm217, %v215, 0.0
    %219 = vadd.xlane.f32.xlu0 %v218
    %v220 = vpop.xlane.xlu0 %219
    %vm221 = vcmp.ge.s32.totalorder %v56, 4
    %vm222 = vcmp.lt.s32.totalorder %v56, 8
    %vm223 = vmand %vm221, %vm222
    %v224 = vsel %vm223, %v39, 0.0
    %v225 = vsel %vm223, %v40, 0.0
    %v226 = vsel %vm223, %v41, 0.0
    %v227 = vsel %vm223, %v42, 0.0
    %v228 = vsel %vm223, %v43, 0.0
    %v229 = vsel %vm223, %v44, 0.0
    %v230 = vsel %vm223, %v45, 0.0
    %v231 = vsel %vm223, %v46, 0.0
    %v232 = vsel %vm223, %v47, 0.0
    %v233 = vsel %vm223, %v48, 0.0
    %v234 = vsel %vm223, %v49, 0.0
    %v235 = vsel %vm223, %v50, 0.0
    %v236 = vsel %vm223, %v51, 0.0
    %v237 = vsel %vm223, %v52, 0.0
    %v238 = vsel %vm223, %v53, 0.0
    %v239 = vsel %vm223, %v54, 0.0
    %240 = vadd.xlane.f32.xlu0 %v224
    %v241 = vpop.xlane.xlu0 %240
    %242 = vadd.xlane.f32.xlu0 %v225
    %v243 = vpop.xlane.xlu0 %242
    %244 = vadd.xlane.f32.xlu0 %v226
    %v245 = vpop.xlane.xlu0 %244
    %246 = vadd.xlane.f32.xlu0 %v227
    %v247 = vpop.xlane.xlu0 %246
    %248 = vadd.xlane.f32.xlu0 %v228
    %v249 = vpop.xlane.xlu0 %248
    %250 = vadd.xlane.f32.xlu0 %v229
    %v251 = vpop.xlane.xlu0 %250
    %252 = vadd.xlane.f32.xlu0 %v230
    %v253 = vpop.xlane.xlu0 %252
    %254 = vadd.xlane.f32.xlu0 %v231
    %v255 = vpop.xlane.xlu0 %254
    %256 = vadd.xlane.f32.xlu0 %v232
    %v257 = vpop.xlane.xlu0 %256
    %258 = vadd.xlane.f32.xlu0 %v233
    %v259 = vpop.xlane.xlu0 %258
    %260 = vadd.xlane.f32.xlu0 %v234
    %v261 = vpop.xlane.xlu0 %260
    %262 = vadd.xlane.f32.xlu0 %v235
    %v263 = vpop.xlane.xlu0 %262
    %264 = vadd.xlane.f32.xlu0 %v236
    %v265 = vpop.xlane.xlu0 %264
    %266 = vadd.xlane.f32.xlu0 %v237
    %v267 = vpop.xlane.xlu0 %266
    %268 = vadd.xlane.f32.xlu0 %v238
    %v269 = vpop.xlane.xlu0 %268
    %270 = vadd.xlane.f32.xlu0 %v239
    %v271 = vpop.xlane.xlu0 %270
    %v288 = vlaneseq
    %v289 = vshrl.u32 %v288, 7
    %v290 = vsub.s32 %v56, %v289
    %v291 = vrot.slane %v241, %v290
    %v292 = vlaneseq
    %v293 = vshrl.u32 %v292, 7
    %v294 = vsub.s32 %v126, %v293
    %v295 = vrot.slane %v243, %v294
    %v296 = vsel %vm131, %v295, %v291
    %v297 = vlaneseq
    %v298 = vshrl.u32 %v297, 7
    %v299 = vsub.s32 %v133, %v298
    %v300 = vrot.slane %v245, %v299
    %v301 = vsel %vm138, %v300, %v296
    %v302 = vlaneseq
    %v303 = vshrl.u32 %v302, 7
    %v304 = vsub.s32 %v140, %v303
    %v305 = vrot.slane %v247, %v304
    %v306 = vsel %vm145, %v305, %v301
    %v307 = vlaneseq
    %v308 = vshrl.u32 %v307, 7
    %v309 = vsub.s32 %v147, %v308
    %v310 = vrot.slane %v249, %v309
    %v311 = vsel %vm152, %v310, %v306
    %v312 = vlaneseq
    %v313 = vshrl.u32 %v312, 7
    %v314 = vsub.s32 %v154, %v313
    %v315 = vrot.slane %v251, %v314
    %v316 = vsel %vm159, %v315, %v311
    %v317 = vlaneseq
    %v318 = vshrl.u32 %v317, 7
    %v319 = vsub.s32 %v161, %v318
    %v320 = vrot.slane %v253, %v319
    %v321 = vsel %vm166, %v320, %v316
    %v322 = vlaneseq
    %v323 = vshrl.u32 %v322, 7
    %v324 = vsub.s32 %v168, %v323
    %v325 = vrot.slane %v255, %v324
    %v326 = vsel %vm173, %v325, %v321
    %v327 = vlaneseq
    %v328 = vshrl.u32 %v327, 7
    %v329 = vsub.s32 %v56, %v328
    %v330 = vrot.slane %v257, %v329
    %v331 = vlaneseq
    %v332 = vshrl.u32 %v331, 7
    %v333 = vsub.s32 %v126, %v332
    %v334 = vrot.slane %v259, %v333
    %v335 = vsel %vm131, %v334, %v330
    %v336 = vlaneseq
    %v337 = vshrl.u32 %v336, 7
    %v338 = vsub.s32 %v133, %v337
    %v339 = vrot.slane %v261, %v338
    %v340 = vsel %vm138, %v339, %v335
    %v341 = vlaneseq
    %v342 = vshrl.u32 %v341, 7
    %v343 = vsub.s32 %v140, %v342
    %v344 = vrot.slane %v263, %v343
    %v345 = vsel %vm145, %v344, %v340
    %v346 = vlaneseq
    %v347 = vshrl.u32 %v346, 7
    %v348 = vsub.s32 %v147, %v347
    %v349 = vrot.slane %v265, %v348
    %v350 = vsel %vm152, %v349, %v345
    %v351 = vlaneseq
    %v352 = vshrl.u32 %v351, 7
    %v353 = vsub.s32 %v154, %v352
    %v354 = vrot.slane %v267, %v353
    %v355 = vsel %vm159, %v354, %v350
    %v356 = vlaneseq
    %v357 = vshrl.u32 %v356, 7
    %v358 = vsub.s32 %v161, %v357
    %v359 = vrot.slane %v269, %v358
    %v360 = vsel %vm166, %v359, %v355
    %v361 = vlaneseq
    %v362 = vshrl.u32 %v361, 7
    %v363 = vsub.s32 %v168, %v362
    %v364 = vrot.slane %v271, %v363
    %v365 = vsel %vm173, %v364, %v360
    %v366 = vsel %vm214, %v365, %v326
    %v368 = vsel %vm217, %v366, 0.0
    %369 = vadd.xlane.f32.xlu0 %v368
    %v370 = vpop.xlane.xlu0 %369
    %v371 = vmul.f32 %v220, 0.0390625
    %v372 = vmul.f32 %v370, 0.0390625
    %v373 = vmax.f32 %v371, %v372
    %v374 = vsub.f32 %v371, %v373
    %v375 = vmul.f32 %v374, 1.442695
    %v376 = vpow.pop %v375
    %v377 = vsub.f32 %v372, %v373
    %v378 = vmul.f32 %v377, 1.442695
    %v379 = vpow.pop %v378
    %v380 = vadd.f32 %v376, %v379
    %v381 = vrcp.pop %v380
    %v382 = vmul.f32 %v376, %v381
    %383 = vst [vmem:[#allocation5] sm:$0x3] %v382
    // Predicated region
    $region10: #{tpu_custom_call.1} parent=1 // pred_check
      _
    $region11: #{tpu_custom_call.1} parent=1 // pred_check_branch
      %385 = sbr.rel (0) target = $region13
    $region12: #{tpu_custom_call.1} parent=1 // pred_region
      %s387 = ssub.s32 32, 32
      %388 = vsyncadd [#allocation4], %s387
      %s390 = sshll.u32 [#allocation5], 4
      %s391 = int_to_ptr.vmem [resolvable:$true] %s390
      %393 = dma.vmem_to_hbm [thread:$0]  %s391, 32, %s1, [#allocation4]
    $region13: #{tpu_custom_call.1} parent=1 // pred_fallthru
      _
    // Predicated region
    $region14: #{tpu_custom_call.1} parent=1 // pred_check
      _
    $region15: #{tpu_custom_call.1} parent=1 // pred_check_branch
      %395 = sbr.rel (0) target = $region17
    $region16: #{tpu_custom_call.1} parent=1 // pred_region
      %396 = dma.done [#allocation4], 32
    $region17: #{tpu_custom_call.1} parent=1 // pred_fallthru
      _
    %397 = vsyncpa [#allocation3], 1
    %398 = vsyncpa [#allocation4], 1

</llo_original>
